<compile_context>
chip_gen: v5e
topology: v5e:2x2
jax: 0.10.0
libtpu: 0.0.40
codegen_flags: <defaults>
</compile_context>

<pallas_src>
import functools

import jax
import jax.numpy as jnp
import numpy as np
from jax.experimental import pallas as pl
from jax.experimental.pallas import tpu as pltpu


def _round_up(v, m):
    return (v + m - 1) // m * m


def _unet_kernel(n_layers, x_ref, w_ref, b_ref, out_ref):
    """Fused whole-network forward for one batch tile.

    x_ref   : (tb, Dpad)            padded input tile
    w_ref   : (2*n_layers, Dpad, Dpad)  slot i<n -> encoder i, slot n+i -> decoder i
    b_ref   : (2*n_layers, Dpad)
    out_ref : (tb, Dpad)            sigmoid(decoder output) + x (padded lanes ignored)
    """
    x = x_ref[...]

    # ---- encode ----
    layers = []
    h = x
    for i in range(n_layers):
        w = w_ref[i]                      # (Dpad, Dpad), static index
        b = b_ref[i:i + 1, :]             # (1, Dpad)
        h = jnp.dot(h, w, preferred_element_type=jnp.float32) + b
        if i < n_layers - 1:
            h = jnp.maximum(h, 0.0)
        layers.append(h)

    # ---- decode (skips are reversed(layers); first skip is z itself -> z+z) ----
    z = h
    for i in range(n_layers):
        w = w_ref[n_layers + i]
        b = b_ref[n_layers + i:n_layers + i + 1, :]
        skip = layers[n_layers - 1 - i]
        z = jnp.dot(z + skip, w, preferred_element_type=jnp.float32) + b
        if i < n_layers - 1:
            z = jnp.maximum(z, 0.0)

    # sigmoid via tanh identity (EUP path) + residual from forward()
    out_ref[...] = 0.5 * jnp.tanh(0.5 * z) + 0.5 + x


def pack_params(enc_params, dec_params, d_pad):
    """Stack (W, b) pairs into one zero-padded weight slab and one bias slab."""
    params = list(enc_params) + list(dec_params)
    n = len(params)
    w_slab = np.zeros((n, d_pad, d_pad), dtype=np.float32)
    b_slab = np.zeros((n, d_pad), dtype=np.float32)
    for i, (w, b) in enumerate(params):
        d_in, d_out = w.shape
        w_slab[i, :d_in, :d_out] = np.asarray(w, dtype=np.float32)
        b_slab[i, :d_out] = np.asarray(b, dtype=np.float32).reshape(-1)
    return jnp.asarray(w_slab), jnp.asarray(b_slab)


def unet_forward(x, enc_params, dec_params, *, batch_tile=512):
    """x: (B, D_in) float32.
    enc_params / dec_params: list of (W, b) with W (in, out) pre-transposed, b (out,).
    """
    n_layers = len(enc_params)
    B, d_in = x.shape

    dims = [d_in] + [int(w.shape[1]) for w, _ in enc_params]
    d_pad = _round_up(max(dims), 128)          # lane-dense feature width

    w_slab, b_slab = pack_params(enc_params, dec_params, d_pad)

    B_pad = _round_up(max(B, 8), 8)            # sublane-aligned batch
    tb = min(batch_tile, B_pad)
    B_pad = _round_up(B_pad, tb)
    x_pad = jnp.zeros((B_pad, d_pad), x.dtype).at[:B, :d_in].set(x)

    grid = (B_pad // tb,)

    # Advisory cost hint (padded FLOPs / tanh count / bytes moved).
    flops = 2 * B_pad * d_pad * d_pad * (2 * n_layers)
    bytes_accessed = 4 * (x_pad.size + w_slab.size + b_slab.size + B_pad * d_pad)
    cost = pl.CostEstimate(flops=flops,
                           transcendentals=B_pad * d_pad,
                           bytes_accessed=bytes_accessed)

    out_pad = pl.pallas_call(
        functools.partial(_unet_kernel, n_layers),
        out_shape=jax.ShapeDtypeStruct((B_pad, d_pad), x.dtype),
        grid=grid,
        in_specs=[
            pl.BlockSpec((tb, d_pad), lambda i: (i, 0)),           # x: stream over batch
            pl.BlockSpec(w_slab.shape, lambda i: (0, 0, 0)),       # weights: VMEM resident
            pl.BlockSpec(b_slab.shape, lambda i: (0, 0)),          # biases:  VMEM resident
        ],
        out_specs=pl.BlockSpec((tb, d_pad), lambda i: (i, 0)),
        compiler_params=pltpu.CompilerParams(
            dimension_semantics=("parallel",)),                    # shard batch across TCs
        cost_estimate=cost,
    )(x_pad, w_slab, b_slab)

    return out_pad[:B, :d_in]


def make_params(key, input_dim, hidden_params):
    """Deterministic synthetic init mirroring the module's __init__ shapes."""
    dims = (input_dim,) + tuple(hidden_params)
    rdims = tuple(reversed(dims))

    def linear(k, d_in, d_out):
        kw, kb = jax.random.split(k)
        bound = 1.0 / np.sqrt(d_in)
        w_t = jax.random.uniform(kw, (d_in, d_out), jnp.float32, -bound, bound)
        b = jax.random.uniform(kb, (d_out,), jnp.float32, -bound, bound)
        return w_t, b

    keys = jax.random.split(key, 2 * (len(dims) - 1))
    enc, dec = [], []
    for i, (d1, d2) in enumerate(zip(dims[:-1], dims[1:])):
        enc.append(linear(keys[i], d1, d2))
    off = len(dims) - 1
    for i, (d1, d2) in enumerate(zip(rdims[:-1], rdims[1:])):
        dec.append(linear(keys[off + i], d1, d2))
    return enc, dec


def unet_reference(x, enc_params, dec_params):
    """Pure-JAX reference for validation (mirrors the PyTorch forward)."""
    n = len(enc_params)
    layers = []
    h = x
    for i, (w, b) in enumerate(enc_params):
        h = h @ w + b
        if i < n - 1:
            h = jnp.maximum(h, 0.0)
        layers.append(h)
    z = h
    for i, (w, b) in enumerate(dec_params):
        z = (z + layers[n - 1 - i]) @ w + b
        if i < n - 1:
            z = jnp.maximum(z, 0.0)
    return jax.nn.sigmoid(z) + x


if __name__ == "__main__":
    # Module config: Unet_module(params=(64, 16), input_dim=32)
    batch = 8
    input_dim = 32
    hidden_params = (64, 16)

    key = jax.random.PRNGKey(0)
    k_x, k_p = jax.random.split(key)
    x = jax.random.normal(k_x, (batch, input_dim), dtype=jnp.float32)
    enc_params, dec_params = make_params(k_p, input_dim, hidden_params)

    out = unet_forward(x, enc_params, dec_params)
    out = jax.block_until_ready(out)

    ref = unet_reference(x, enc_params, dec_params)
    np.testing.assert_allclose(np.asarray(out), np.asarray(ref), rtol=1e-5, atol=1e-5)

    print("KERNEL_OK")
</pallas_src>

<mosaic_0001>
module attributes {stable_mosaic.version = 11 : i64} {
  func.func @_unet_kernel(%arg0: i32, %arg1: memref<8x128xf32, #tpu.memory_space<vmem>>, %arg2: memref<4x128x128xf32, #tpu.memory_space<vmem>>, %arg3: memref<4x128xf32, #tpu.memory_space<vmem>>, %arg4: memref<8x128xf32, #tpu.memory_space<vmem>>) attributes {dimension_semantics = [#tpu.dimension_semantics<parallel>], iteration_bounds = array<i64: 1>, scalar_prefetch = 0 : i64, scratch_operands = 0 : i64, tpu.core_type = #tpu.core_type<tc>, window_params = [{transform_indices = @transform_0, window_bounds = array<i64: 8, 128>}, {pipeline_mode = #tpu.pipeline_mode<synchronous>, transform_indices = @transform_1, window_bounds = array<i64: 4, 128, 128>}, {pipeline_mode = #tpu.pipeline_mode<synchronous>, transform_indices = @transform_2, window_bounds = array<i64: 4, 128>}, {transform_indices = @transform_3, window_bounds = array<i64: 8, 128>}]} {
    %c0 = arith.constant 0 : index
    %c0_0 = arith.constant 0 : index
    %0 = vector.load %arg1[%c0, %c0_0] : memref<8x128xf32, #tpu.memory_space<vmem>>, vector<8x128xf32>
    %c0_1 = arith.constant 0 : index
    %c0_2 = arith.constant 0 : index
    %c0_3 = arith.constant 0 : index
    %1 = vector.load %arg2[%c0_1, %c0_2, %c0_3] : memref<4x128x128xf32, #tpu.memory_space<vmem>>, vector<1x128x128xf32>
    %2 = vector.shape_cast %1 : vector<1x128x128xf32> to vector<128x128xf32>
    %c0_4 = arith.constant 0 : index
    %c0_5 = arith.constant 0 : index
    %3 = vector.load %arg3[%c0_4, %c0_5] : memref<4x128xf32, #tpu.memory_space<vmem>>, vector<1x128xf32>
    %cst = arith.constant dense<0.000000e+00> : vector<8x128xf32>
    %4 = tpu.matmul %0, %2, %cst {dimension_numbers = #tpu.dot_dimension_numbers<[1], [0], [0], [1], [0, 0, 1, 1], [], []>} : vector<8x128xf32>, vector<128x128xf32>, vector<8x128xf32> -> vector<8x128xf32>
    %5 = vector.broadcast %3 : vector<1x128xf32> to vector<8x128xf32>
    %6 = arith.addf %4, %5 : vector<8x128xf32>
    %cst_6 = arith.constant 0.000000e+00 : f32
    %7 = vector.broadcast %cst_6 : f32 to vector<8x128xf32>
    %8 = arith.maximumf %6, %7 : vector<8x128xf32>
    %c1 = arith.constant 1 : index
    %c0_7 = arith.constant 0 : index
    %c0_8 = arith.constant 0 : index
    %9 = vector.load %arg2[%c1, %c0_7, %c0_8] : memref<4x128x128xf32, #tpu.memory_space<vmem>>, vector<1x128x128xf32>
    %10 = vector.shape_cast %9 : vector<1x128x128xf32> to vector<128x128xf32>
    %c1_9 = arith.constant 1 : index
    %c0_10 = arith.constant 0 : index
    %11 = vector.load %arg3[%c1_9, %c0_10] : memref<4x128xf32, #tpu.memory_space<vmem>>, vector<1x128xf32>
    %cst_11 = arith.constant dense<0.000000e+00> : vector<8x128xf32>
    %12 = tpu.matmul %8, %10, %cst_11 {dimension_numbers = #tpu.dot_dimension_numbers<[1], [0], [0], [1], [0, 0, 1, 1], [], []>} : vector<8x128xf32>, vector<128x128xf32>, vector<8x128xf32> -> vector<8x128xf32>
    %13 = vector.broadcast %11 : vector<1x128xf32> to vector<8x128xf32>
    %14 = arith.addf %12, %13 : vector<8x128xf32>
    %c2 = arith.constant 2 : index
    %c0_12 = arith.constant 0 : index
    %c0_13 = arith.constant 0 : index
    %15 = vector.load %arg2[%c2, %c0_12, %c0_13] : memref<4x128x128xf32, #tpu.memory_space<vmem>>, vector<1x128x128xf32>
    %16 = vector.shape_cast %15 : vector<1x128x128xf32> to vector<128x128xf32>
    %c2_14 = arith.constant 2 : index
    %c0_15 = arith.constant 0 : index
    %17 = vector.load %arg3[%c2_14, %c0_15] : memref<4x128xf32, #tpu.memory_space<vmem>>, vector<1x128xf32>
    %18 = arith.addf %14, %14 : vector<8x128xf32>
    %cst_16 = arith.constant dense<0.000000e+00> : vector<8x128xf32>
    %19 = tpu.matmul %18, %16, %cst_16 {dimension_numbers = #tpu.dot_dimension_numbers<[1], [0], [0], [1], [0, 0, 1, 1], [], []>} : vector<8x128xf32>, vector<128x128xf32>, vector<8x128xf32> -> vector<8x128xf32>
    %20 = vector.broadcast %17 : vector<1x128xf32> to vector<8x128xf32>
    %21 = arith.addf %19, %20 : vector<8x128xf32>
    %cst_17 = arith.constant 0.000000e+00 : f32
    %22 = vector.broadcast %cst_17 : f32 to vector<8x128xf32>
    %23 = arith.maximumf %21, %22 : vector<8x128xf32>
    %c3 = arith.constant 3 : index
    %c0_18 = arith.constant 0 : index
    %c0_19 = arith.constant 0 : index
    %24 = vector.load %arg2[%c3, %c0_18, %c0_19] : memref<4x128x128xf32, #tpu.memory_space<vmem>>, vector<1x128x128xf32>
    %25 = vector.shape_cast %24 : vector<1x128x128xf32> to vector<128x128xf32>
    %c3_20 = arith.constant 3 : index
    %c0_21 = arith.constant 0 : index
    %26 = vector.load %arg3[%c3_20, %c0_21] : memref<4x128xf32, #tpu.memory_space<vmem>>, vector<1x128xf32>
    %27 = arith.addf %23, %8 : vector<8x128xf32>
    %cst_22 = arith.constant dense<0.000000e+00> : vector<8x128xf32>
    %28 = tpu.matmul %27, %25, %cst_22 {dimension_numbers = #tpu.dot_dimension_numbers<[1], [0], [0], [1], [0, 0, 1, 1], [], []>} : vector<8x128xf32>, vector<128x128xf32>, vector<8x128xf32> -> vector<8x128xf32>
    %29 = vector.broadcast %26 : vector<1x128xf32> to vector<8x128xf32>
    %30 = arith.addf %28, %29 : vector<8x128xf32>
    %cst_23 = arith.constant 5.000000e-01 : f32
    %31 = vector.broadcast %cst_23 : f32 to vector<8x128xf32>
    %32 = arith.mulf %31, %30 : vector<8x128xf32>
    %33 = math.tanh %32 : vector<8x128xf32>
    %cst_24 = arith.constant 5.000000e-01 : f32
    %34 = vector.broadcast %cst_24 : f32 to vector<8x128xf32>
    %35 = arith.mulf %34, %33 : vector<8x128xf32>
    %cst_25 = arith.constant 5.000000e-01 : f32
    %36 = vector.broadcast %cst_25 : f32 to vector<8x128xf32>
    %37 = arith.addf %35, %36 : vector<8x128xf32>
    %38 = arith.addf %37, %0 : vector<8x128xf32>
    %c0_26 = arith.constant 0 : index
    %c0_27 = arith.constant 0 : index
    %39 = vector.load %arg4[%c0_26, %c0_27] : memref<8x128xf32, #tpu.memory_space<vmem>>, vector<8x128xf32>
    tpu.vector_store %arg4[%c0_26, %c0_27], %38 {strides = array<i32>} : memref<8x128xf32, #tpu.memory_space<vmem>>, vector<8x128xf32>,
    return
  }
  func.func @transform_0(%arg0: i32) -> (i32, i32) {
    %c0_i32 = arith.constant 0 : i32
    %c0_i32_0 = arith.constant 0 : i32
    return %arg0, %c0_i32 : i32, i32
  }
  func.func @transform_1(%arg0: i32) -> (i32, i32, i32) {
    %c0_i32 = arith.constant 0 : i32
    %c0_i32_0 = arith.constant 0 : i32
    %c0_i32_1 = arith.constant 0 : i32
    %c0_i32_2 = arith.constant 0 : i32
    return %c0_i32, %c0_i32_0, %c0_i32_1 : i32, i32, i32
  }
  func.func @transform_2(%arg0: i32) -> (i32, i32) {
    %c0_i32 = arith.constant 0 : i32
    %c0_i32_0 = arith.constant 0 : i32
    %c0_i32_1 = arith.constant 0 : i32
    return %c0_i32, %c0_i32_0 : i32, i32
  }
  func.func @transform_3(%arg0: i32) -> (i32, i32) {
    %c0_i32 = arith.constant 0 : i32
    %c0_i32_0 = arith.constant 0 : i32
    return %arg0, %c0_i32 : i32, i32
  }
}

</mosaic_0001>

<llo_original>
// kernel: tpu_custom_call.1
$region0: #{tpu_custom_call.1}
  #allocation0 [shape = 'u32[]', space=smem, size = 0x4, offset = 0x4, fixed_abs, tag = 'smem constant byte address 0x4 - core index']
  #allocation1 [shape = 'u32[72,128]{1,0:T(1,128)}', space=vmem, size = 0x9000, scoped, tag = 'internal scratch']
  %s0 = inlined_call_operand.hbm [shape: f32[8,128], index: 0, kind: input, shape index: {}]
  %s1 = inlined_call_operand.hbm [shape: f32[4,128,128], index: 1, kind: input, shape index: {}]
  %s2 = inlined_call_operand.hbm [shape: f32[4,128], index: 2, kind: input, shape index: {}]
  %s3 = inlined_call_operand.hbm [shape: f32[8,128], index: 3, kind: output, shape index: {}]
  %s4 = sld [smem:[#allocation0]]
  $region34: #{tpu_custom_call.1} parent=0
    _
  %s6 = ssub.s32 1, %s4
  %s7 = scalar_select 0, %s6, %s4
  $region1: #{tpu_custom_call.1} parent=0
    #allocation2 [shape = 'u8[4096]{0}', space=vmem, size = 0x1000, scoped, tag = 'input window, operand 0, single buffered']
    #allocation3 [shape = 's32[1]{0}', space=sflag, size = 0x4, scoped, tag = 'scoped memory for tpu_custom_call.1']
    #allocation4 [shape = 's32[1]{0}', space=sflag, size = 0x4, scoped, tag = 'scoped memory for tpu_custom_call.1']
    #allocation5 [shape = 'u8[262144]{0}', space=vmem, size = 0x40000, scoped, tag = 'input window, operand 1, single buffered']
    #allocation6 [shape = 's32[1]{0}', space=sflag, size = 0x4, scoped, tag = 'scoped memory for tpu_custom_call.1']
    #allocation7 [shape = 'u8[2048]{0}', space=vmem, size = 0x800, scoped, tag = 'input window, operand 2, single buffered']
    #allocation8 [shape = 'u8[4096]{0}', space=vmem, size = 0x1000, scoped, tag = 'output window, operand 0, single buffered']
    %8 = vsyncpa [#allocation3], 0
    %9 = vsyncpa [#allocation6], 0
    %10 = vsyncpa [#allocation4], 0
    // Predicated region
    $region2: #{tpu_custom_call.1} parent=1 // pred_check
      _
    $region3: #{tpu_custom_call.1} parent=1 // pred_check_branch
      %12 = sbr.rel (0) target = $region5
    $region4: #{tpu_custom_call.1} parent=1 // pred_region
      %14 = vsyncadd [#allocation3], 0
      %s16 = sshll.u32 %s0, 4
      %s17 = int_to_ptr.hbm [resolvable:$true] %s16
      %s18 = sshll.u32 [#allocation2], 4
      %s19 = int_to_ptr.vmem [resolvable:$true] %s18
      %21 = dma.hbm_to_vmem [thread:$0]  %s17, 128, %s19, [#allocation3]
    $region5: #{tpu_custom_call.1} parent=1 // pred_fallthru
      _
    // Predicated region
    $region6: #{tpu_custom_call.1} parent=1 // pred_check
      _
    $region7: #{tpu_custom_call.1} parent=1 // pred_check_branch
      %23 = sbr.rel (0) target = $region9
    $region8: #{tpu_custom_call.1} parent=1 // pred_region
      %25 = vsyncadd [#allocation6], 0
      %s26 = sshll.u32 %s1, 4
      %s27 = int_to_ptr.hbm [resolvable:$true] %s26
      %s28 = sshll.u32 [#allocation5], 4
      %s29 = int_to_ptr.vmem [resolvable:$true] %s28
      %34 = dma.hbm_to_vmem [thread:$0]  %s27, 8192, %s29, [#allocation6], 128, 128, 8
    $region9: #{tpu_custom_call.1} parent=1 // pred_fallthru
      _
    // Predicated region
    $region10: #{tpu_custom_call.1} parent=1 // pred_check
      _
    $region11: #{tpu_custom_call.1} parent=1 // pred_check_branch
      %36 = sbr.rel (0) target = $region13
    $region12: #{tpu_custom_call.1} parent=1 // pred_region
      %38 = vsyncadd [#allocation6], 0
      %s40 = sshll.u32 %s2, 4
      %s41 = int_to_ptr.hbm [resolvable:$true] %s40
      %s42 = sshll.u32 [#allocation7], 4
      %s43 = int_to_ptr.vmem [resolvable:$true] %s42
      %45 = dma.hbm_to_vmem [thread:$0]  %s41, 64, %s43, [#allocation6]
    $region13: #{tpu_custom_call.1} parent=1 // pred_fallthru
      _
    // Predicated region
    $region14: #{tpu_custom_call.1} parent=1 // pred_check
      _
    $region15: #{tpu_custom_call.1} parent=1 // pred_check_branch
      %47 = sbr.rel (0) target = $region17
    $region16: #{tpu_custom_call.1} parent=1 // pred_region
      %49 = dma.done [#allocation3], 128
    $region17: #{tpu_custom_call.1} parent=1 // pred_fallthru
      _
    // Predicated region
    $region18: #{tpu_custom_call.1} parent=1 // pred_check
      _
    $region19: #{tpu_custom_call.1} parent=1 // pred_check_branch
      %51 = sbr.rel (0) target = $region21
    $region20: #{tpu_custom_call.1} parent=1 // pred_region
      %53 = dma.done [#allocation6], 8192
    $region21: #{tpu_custom_call.1} parent=1 // pred_fallthru
      _
    // Predicated region
    $region22: #{tpu_custom_call.1} parent=1 // pred_check
      _
    $region23: #{tpu_custom_call.1} parent=1 // pred_check_branch
      %55 = sbr.rel (0) target = $region25
    $region24: #{tpu_custom_call.1} parent=1 // pred_region
      %57 = dma.done [#allocation6], 64
    $region25: #{tpu_custom_call.1} parent=1 // pred_fallthru
      _
    %v58 = vld [vmem:[#allocation2] sm:$0xff]
    %v59 = vld [vmem:[#allocation5] sm:$0xff]
    %v60 = vld [vmem:[#allocation5 + $0x8] sm:$0xff]
    %v61 = vld [vmem:[#allocation5 + $0x10] sm:$0xff]
    %v62 = vld [vmem:[#allocation5 + $0x18] sm:$0xff]
    %v63 = vld [vmem:[#allocation5 + $0x20] sm:$0xff]
    %v64 = vld [vmem:[#allocation5 + $0x28] sm:$0xff]
    %v65 = vld [vmem:[#allocation5 + $0x30] sm:$0xff]
    %v66 = vld [vmem:[#allocation5 + $0x38] sm:$0xff]
    %v67 = vld [vmem:[#allocation5 + $0x40] sm:$0xff]
    %v68 = vld [vmem:[#allocation5 + $0x48] sm:$0xff]
    %v69 = vld [vmem:[#allocation5 + $0x50] sm:$0xff]
    %v70 = vld [vmem:[#allocation5 + $0x58] sm:$0xff]
    %v71 = vld [vmem:[#allocation5 + $0x60] sm:$0xff]
    %v72 = vld [vmem:[#allocation5 + $0x68] sm:$0xff]
    %v73 = vld [vmem:[#allocation5 + $0x70] sm:$0xff]
    %v74 = vld [vmem:[#allocation5 + $0x78] sm:$0xff]
    %v75 = vld [vmem:[#allocation7] sm:$0x1]
    %v76 = vperm.slane %v75, 0
    %77 = vmatpush.msra.mxu0 %v74
    %78 = vmatpush.msra.mxu0 %v73
    %79 = vmatpush.msra.mxu0 %v72
    %80 = vmatpush.msra.mxu0 %v71
    %81 = vmatpush.msra.mxu0 %v70
    %82 = vmatpush.msra.mxu0 %v69
    %83 = vmatpush.msra.mxu0 %v68
    %84 = vmatpush.msra.mxu0 %v67
    %85 = vmatpush.msra.mxu0 %v66
    %86 = vmatpush.msra.mxu0 %v65
    %87 = vmatpush.msra.mxu0 %v64
    %88 = vmatpush.msra.mxu0 %v63
    %89 = vmatpush.msra.mxu0 %v62
    %90 = vmatpush.msra.mxu0 %v61
    %91 = vmatpush.msra.mxu0 %v60
    %92 = vmatpush.msra.mxu0 %v59
    %93 = vmatmul.f32.gmra.mxu0 %v58
    %v94 = vpop.f32.mrf.mxu0
    %v95 = vadd.f32 %v76, %v94
    %96 = vdwg.mxu0
    %v97 = vmax.f32 %v95, 0.0
    %s98 = scalar_lea.vmem [#allocation5], 128
    %v99 = vld [vmem:[%s98] sm:$0xff]
    %v100 = vld [vmem:[%s98 + $0x8] sm:$0xff]
    %v101 = vld [vmem:[%s98 + $0x10] sm:$0xff]
    %v102 = vld [vmem:[%s98 + $0x18] sm:$0xff]
    %v103 = vld [vmem:[%s98 + $0x20] sm:$0xff]
    %v104 = vld [vmem:[%s98 + $0x28] sm:$0xff]
    %v105 = vld [vmem:[%s98 + $0x30] sm:$0xff]
    %v106 = vld [vmem:[%s98 + $0x38] sm:$0xff]
    %v107 = vld [vmem:[%s98 + $0x40] sm:$0xff]
    %v108 = vld [vmem:[%s98 + $0x48] sm:$0xff]
    %v109 = vld [vmem:[%s98 + $0x50] sm:$0xff]
    %v110 = vld [vmem:[%s98 + $0x58] sm:$0xff]
    %v111 = vld [vmem:[%s98 + $0x60] sm:$0xff]
    %v112 = vld [vmem:[%s98 + $0x68] sm:$0xff]
    %v113 = vld [vmem:[%s98 + $0x70] sm:$0xff]
    %v114 = vld [vmem:[%s98 + $0x78] sm:$0xff]
    %v115 = vld [vmem:[#allocation7 + $0x1] sm:$0x1]
    %v116 = vperm.slane %v115, 0
    %117 = vmatpush.msra.mxu0 %v114
    %118 = vmatpush.msra.mxu0 %v113
    %119 = vmatpush.msra.mxu0 %v112
    %120 = vmatpush.msra.mxu0 %v111
    %121 = vmatpush.msra.mxu0 %v110
    %122 = vmatpush.msra.mxu0 %v109
    %123 = vmatpush.msra.mxu0 %v108
    %124 = vmatpush.msra.mxu0 %v107
    %125 = vmatpush.msra.mxu0 %v106
    %126 = vmatpush.msra.mxu0 %v105
    %127 = vmatpush.msra.mxu0 %v104
    %128 = vmatpush.msra.mxu0 %v103
    %129 = vmatpush.msra.mxu0 %v102
    %130 = vmatpush.msra.mxu0 %v101
    %131 = vmatpush.msra.mxu0 %v100
    %132 = vmatpush.msra.mxu0 %v99
    %133 = vmatmul.f32.gmra.mxu0 %v97
    %v134 = vpop.f32.mrf.mxu0
    %v135 = vadd.f32 %v116, %v134
    %136 = vdwg.mxu0
    %s137 = scalar_lea.vmem [#allocation5], 256
    %v138 = vld [vmem:[%s137] sm:$0xff]
    %v139 = vld [vmem:[%s137 + $0x8] sm:$0xff]
    %v140 = vld [vmem:[%s137 + $0x10] sm:$0xff]
    %v141 = vld [vmem:[%s137 + $0x18] sm:$0xff]
    %v142 = vld [vmem:[%s137 + $0x20] sm:$0xff]
    %v143 = vld [vmem:[%s137 + $0x28] sm:$0xff]
    %v144 = vld [vmem:[%s137 + $0x30] sm:$0xff]
    %v145 = vld [vmem:[%s137 + $0x38] sm:$0xff]
    %v146 = vld [vmem:[%s137 + $0x40] sm:$0xff]
    %v147 = vld [vmem:[%s137 + $0x48] sm:$0xff]
    %v148 = vld [vmem:[%s137 + $0x50] sm:$0xff]
    %v149 = vld [vmem:[%s137 + $0x58] sm:$0xff]
    %v150 = vld [vmem:[%s137 + $0x60] sm:$0xff]
    %v151 = vld [vmem:[%s137 + $0x68] sm:$0xff]
    %v152 = vld [vmem:[%s137 + $0x70] sm:$0xff]
    %v153 = vld [vmem:[%s137 + $0x78] sm:$0xff]
    %v154 = vld [vmem:[#allocation7 + $0x2] sm:$0x1]
    %v155 = vadd.f32 %v135, %v135
    %v156 = vperm.slane %v154, 0
    %157 = vmatpush.msra.mxu0 %v153
    %158 = vmatpush.msra.mxu0 %v152
    %159 = vmatpush.msra.mxu0 %v151
    %160 = vmatpush.msra.mxu0 %v150
    %161 = vmatpush.msra.mxu0 %v149
    %162 = vmatpush.msra.mxu0 %v148
    %163 = vmatpush.msra.mxu0 %v147
    %164 = vmatpush.msra.mxu0 %v146
    %165 = vmatpush.msra.mxu0 %v145
    %166 = vmatpush.msra.mxu0 %v144
    %167 = vmatpush.msra.mxu0 %v143
    %168 = vmatpush.msra.mxu0 %v142
    %169 = vmatpush.msra.mxu0 %v141
    %170 = vmatpush.msra.mxu0 %v140
    %171 = vmatpush.msra.mxu0 %v139
    %172 = vmatpush.msra.mxu0 %v138
    %173 = vmatmul.f32.gmra.mxu0 %v155
    %v174 = vpop.f32.mrf.mxu0
    %v175 = vadd.f32 %v156, %v174
    %176 = vdwg.mxu0
    %v177 = vmax.f32 %v175, 0.0
    %s178 = scalar_lea.vmem [#allocation5], 384
    %v179 = vld [vmem:[%s178] sm:$0xff]
    %v180 = vld [vmem:[%s178 + $0x8] sm:$0xff]
    %v181 = vld [vmem:[%s178 + $0x10] sm:$0xff]
    %v182 = vld [vmem:[%s178 + $0x18] sm:$0xff]
    %v183 = vld [vmem:[%s178 + $0x20] sm:$0xff]
    %v184 = vld [vmem:[%s178 + $0x28] sm:$0xff]
    %v185 = vld [vmem:[%s178 + $0x30] sm:$0xff]
    %v186 = vld [vmem:[%s178 + $0x38] sm:$0xff]
    %v187 = vld [vmem:[%s178 + $0x40] sm:$0xff]
    %v188 = vld [vmem:[%s178 + $0x48] sm:$0xff]
    %v189 = vld [vmem:[%s178 + $0x50] sm:$0xff]
    %v190 = vld [vmem:[%s178 + $0x58] sm:$0xff]
    %v191 = vld [vmem:[%s178 + $0x60] sm:$0xff]
    %v192 = vld [vmem:[%s178 + $0x68] sm:$0xff]
    %v193 = vld [vmem:[%s178 + $0x70] sm:$0xff]
    %v194 = vld [vmem:[%s178 + $0x78] sm:$0xff]
    %v195 = vld [vmem:[#allocation7 + $0x3] sm:$0x1]
    %v196 = vadd.f32 %v177, %v97
    %v197 = vperm.slane %v195, 0
    %198 = vmatpush.msra.mxu0 %v194
    %199 = vmatpush.msra.mxu0 %v193
    %200 = vmatpush.msra.mxu0 %v192
    %201 = vmatpush.msra.mxu0 %v191
    %202 = vmatpush.msra.mxu0 %v190
    %203 = vmatpush.msra.mxu0 %v189
    %204 = vmatpush.msra.mxu0 %v188
    %205 = vmatpush.msra.mxu0 %v187
    %206 = vmatpush.msra.mxu0 %v186
    %207 = vmatpush.msra.mxu0 %v185
    %208 = vmatpush.msra.mxu0 %v184
    %209 = vmatpush.msra.mxu0 %v183
    %210 = vmatpush.msra.mxu0 %v182
    %211 = vmatpush.msra.mxu0 %v181
    %212 = vmatpush.msra.mxu0 %v180
    %213 = vmatpush.msra.mxu0 %v179
    %214 = vmatmul.f32.gmra.mxu0 %v196
    %v215 = vpop.f32.mrf.mxu0
    %v216 = vadd.f32 %v197, %v215
    %217 = vdwg.mxu0
    %v218 = vmul.f32 %v216, 0.5
    %v219 = vtanh.pop %v218
    %v220 = vmul.f32 %v219, 0.5
    %v221 = vadd.f32 %v220, 0.5
    %v222 = vadd.f32 %v221, %v58
    %223 = vst [vmem:[#allocation8] sm:$0xff] %v222
    // Predicated region
    $region26: #{tpu_custom_call.1} parent=1 // pred_check
      _
    $region27: #{tpu_custom_call.1} parent=1 // pred_check_branch
      %225 = sbr.rel (0) target = $region29
    $region28: #{tpu_custom_call.1} parent=1 // pred_region
      %227 = vsyncadd [#allocation4], 0
      %s229 = sshll.u32 [#allocation8], 4
      %s230 = int_to_ptr.vmem [resolvable:$true] %s229
      %s231 = sshll.u32 %s3, 4
      %s232 = int_to_ptr.hbm [resolvable:$true] %s231
      %234 = dma.vmem_to_hbm [thread:$0]  %s230, 128, %s232, [#allocation4]
    $region29: #{tpu_custom_call.1} parent=1 // pred_fallthru
      _
    // Predicated region
    $region30: #{tpu_custom_call.1} parent=1 // pred_check
      _
    $region31: #{tpu_custom_call.1} parent=1 // pred_check_branch
      %236 = sbr.rel (0) target = $region33
    $region32: #{tpu_custom_call.1} parent=1 // pred_region
      %238 = dma.done [#allocation4], 128
    $region33: #{tpu_custom_call.1} parent=1 // pred_fallthru
      _
    %239 = vsyncpa [#allocation3], 1
    %240 = vsyncpa [#allocation6], 1
    %241 = vsyncpa [#allocation4], 1

</llo_original>
